<compile_context>
chip_gen: v7x
topology: tpu7x:2x2x1
jax: 0.10.0
libtpu: 0.0.40
codegen_flags: <defaults>
</compile_context>

<pallas_src>
import functools

import jax
import jax.numpy as jnp
from jax.experimental import pallas as pl
from jax.experimental.pallas import tpu as pltpu

EPS = 1e-8           # matches torch F.cosine_similarity default eps
NEG_BIG = -1e30      # bias for padded memory columns


def memory_module_kernel(x_ref, mem_ref, scale_ref, bias_ref, out_ref):
    x = x_ref[...]                                  # (TB, F)
    mem = mem_ref[...]                              # (M_pad, F), zero-padded rows
    scale = scale_ref[...]                          # (1, M_pad) = 1/max(||m||, eps), 0 for pads
    bias = bias_ref[...]                            # (1, M_pad) = 0 valid, -1e30 padded

    TB = x.shape[0]
    M_pad = mem.shape[0]

    # --- scores: x . m_j / ||m_j||  (x-norm dropped; argmax-invariant) ---
    # Contract on the last dim of BOTH operands -> no explicit mem.T / XLU transpose.
    dots = jax.lax.dot_general(
        x, mem,
        dimension_numbers=(((1,), (1,)), ((), ())),
        preferred_element_type=jnp.float32)         # (TB, M_pad)
    scores = dots * scale + bias                    # padded columns -> -1e30

    # --- argmax over memory dim, first-index tie-break (matches torch.max) ---
    max_val = jnp.max(scores, axis=-1, keepdims=True)                    # (TB, 1)
    col = jax.lax.broadcasted_iota(jnp.int32, (TB, M_pad), dimension=1)  # (TB, M_pad)
    cand = jnp.where(scores >= max_val, col, M_pad)                      # (TB, M_pad)
    idx = jnp.min(cand, axis=-1, keepdims=True)                          # (TB, 1)

    # --- gather memory rows via one-hot matmul (TPU-friendly gather) ---
    one_hot = (col == idx).astype(mem.dtype)                             # (TB, M_pad)
    selected = jnp.dot(one_hot, mem, preferred_element_type=jnp.float32) # (TB, F)

    out_ref[...] = (x.astype(jnp.float32) + selected).astype(out_ref.dtype)


def _round_up(v, m):
    return ((v + m - 1) // m) * m


@functools.partial(jax.jit, static_argnames=("block_b",))
def memory_module_forward(x, memory, *, block_b=512):
    """x: (B, F), memory: (M, F) -> (B, F)."""
    B, F = x.shape
    M = memory.shape[0]

    # ---- host/XLA-side preprocessing (amortized; memory is a parameter) ----
    mem_f32 = memory.astype(jnp.float32)
    m_norm_sq = jnp.sum(mem_f32 * mem_f32, axis=-1)                 # (M,)
    # 1 / max(||m||, eps) via rsqrt on the squared norm (EUP-style op, no sqrt+div)
    inv_m_norm = jax.lax.rsqrt(jnp.maximum(m_norm_sq, EPS * EPS))   # (M,)

    M_pad = _round_up(max(M, 1), 128)                               # lane-dense scores
    mem_pad = jnp.zeros((M_pad, F), memory.dtype).at[:M].set(memory)
    scale = jnp.zeros((1, M_pad), jnp.float32).at[0, :M].set(inv_m_norm)
    bias = jnp.full((1, M_pad), NEG_BIG, jnp.float32).at[0, :M].set(0.0)

    # ---- batch tiling (sublane-aligned; big tiles, pipelined DMAs) ----
    TB = block_b if B >= block_b else _round_up(B, 8)
    B_pad = _round_up(B, TB)
    if B_pad != B:
        x_in = jnp.zeros((B_pad, F), x.dtype).at[:B].set(x)
    else:
        x_in = x

    out = pl.pallas_call(
        memory_module_kernel,
        out_shape=jax.ShapeDtypeStruct((B_pad, F), x.dtype),
        grid_spec=pltpu.PrefetchScalarGridSpec(
            num_scalar_prefetch=0,
            grid=(B_pad // TB,),
            in_specs=[
                pl.BlockSpec((TB, F), lambda i: (i, 0)),       # x tile (pipelined)
                pl.BlockSpec((M_pad, F), lambda i: (0, 0)),    # memory: VMEM-resident
                pl.BlockSpec((1, M_pad), lambda i: (0, 0)),    # inv norms (resident)
                pl.BlockSpec((1, M_pad), lambda i: (0, 0)),    # pad bias  (resident)
            ],
            out_specs=pl.BlockSpec((TB, F), lambda i: (i, 0)),
        ),
        compiler_params=pltpu.CompilerParams(
            dimension_semantics=("parallel",),   # shard batch tiles across TCs (v7x)
            vmem_limit_bytes=64 << 20,           # explicit budget; TB=512 fits v7x's 64 MiB
        ),
    )(x_in, mem_pad, scale, bias)

    return out[:B]


if __name__ == "__main__":
    key = jax.random.PRNGKey(0)
    kx, km = jax.random.split(key)

    batch = 8
    input_features = 128
    memory_size = 8

    x = jax.random.normal(kx, (batch, input_features), dtype=jnp.float32)
    # deterministic "randn" init of the memory parameter, as in __init__
    memory = jax.random.normal(km, (memory_size, input_features), dtype=jnp.float32)

    out = memory_module_forward(x, memory)
    out = jax.block_until_ready(out)

    # reference check in plain JAX (same semantics as the PyTorch forward)
    xn = jnp.maximum(jnp.linalg.norm(x, axis=-1, keepdims=True), EPS)
    mn = jnp.maximum(jnp.linalg.norm(memory, axis=-1, keepdims=True), EPS)
    sim_ref = (x @ memory.T) / (xn * mn.T)
    idx_ref = jnp.argmax(sim_ref, axis=1)
    ref = x + memory[idx_ref]
    assert jnp.allclose(out, ref, atol=1e-5, rtol=1e-5), "mismatch vs reference"

    print("KERNEL_OK")
</pallas_src>

<mosaic_0001>
module attributes {stable_mosaic.version = 11 : i64} {
  func.func @memory_module_kernel(%arg0: i32, %arg1: memref<8x128xf32, #tpu.memory_space<vmem>>, %arg2: memref<128x128xf32, #tpu.memory_space<vmem>>, %arg3: memref<1x128xf32, #tpu.memory_space<vmem>>, %arg4: memref<1x128xf32, #tpu.memory_space<vmem>>, %arg5: memref<8x128xf32, #tpu.memory_space<vmem>>) attributes {dimension_semantics = [#tpu.dimension_semantics<parallel>], iteration_bounds = array<i64: 1>, scalar_prefetch = 0 : i64, scratch_operands = 0 : i64, tpu.core_type = #tpu.core_type<tc>, window_params = [{transform_indices = @transform_0, window_bounds = array<i64: 8, 128>}, {pipeline_mode = #tpu.pipeline_mode<synchronous>, transform_indices = @transform_1, window_bounds = array<i64: 128, 128>}, {pipeline_mode = #tpu.pipeline_mode<synchronous>, transform_indices = @transform_2, window_bounds = array<i64: 1, 128>}, {pipeline_mode = #tpu.pipeline_mode<synchronous>, transform_indices = @transform_3, window_bounds = array<i64: 1, 128>}, {transform_indices = @transform_4, window_bounds = array<i64: 8, 128>}]} {
    %c0 = arith.constant 0 : index
    %c0_0 = arith.constant 0 : index
    %0 = vector.load %arg1[%c0, %c0_0] : memref<8x128xf32, #tpu.memory_space<vmem>>, vector<8x128xf32>
    %c0_1 = arith.constant 0 : index
    %c0_2 = arith.constant 0 : index
    %1 = vector.load %arg2[%c0_1, %c0_2] : memref<128x128xf32, #tpu.memory_space<vmem>>, vector<128x128xf32>
    %c0_3 = arith.constant 0 : index
    %c0_4 = arith.constant 0 : index
    %2 = vector.load %arg3[%c0_3, %c0_4] : memref<1x128xf32, #tpu.memory_space<vmem>>, vector<1x128xf32>
    %c0_5 = arith.constant 0 : index
    %c0_6 = arith.constant 0 : index
    %3 = vector.load %arg4[%c0_5, %c0_6] : memref<1x128xf32, #tpu.memory_space<vmem>>, vector<1x128xf32>
    %cst = arith.constant dense<0.000000e+00> : vector<8x128xf32>
    %4 = tpu.matmul %0, %1, %cst {dimension_numbers = #tpu.dot_dimension_numbers<[1], [1], [0], [0], [0, 0, 1, 0], [], []>} : vector<8x128xf32>, vector<128x128xf32>, vector<8x128xf32> -> vector<8x128xf32>
    %5 = vector.broadcast %2 : vector<1x128xf32> to vector<8x128xf32>
    %6 = arith.mulf %4, %5 : vector<8x128xf32>
    %7 = vector.broadcast %3 : vector<1x128xf32> to vector<8x128xf32>
    %8 = arith.addf %6, %7 : vector<8x128xf32>
    %cst_7 = arith.constant dense<0xFF800000> : vector<8xf32>
    %9 = vector.multi_reduction <maximumf>, %8, %cst_7 [1] : vector<8x128xf32> to vector<8xf32>
    %10 = vector.shape_cast %9 : vector<8xf32> to vector<8x1xf32>
    %11 = tpu.iota {dimensions = array<i32: 1>} : vector<8x128xi32>
    %12 = vector.broadcast %10 : vector<8x1xf32> to vector<8x128xf32>
    %13 = arith.cmpf oge, %8, %12 : vector<8x128xf32>
    %c128_i32 = arith.constant 128 : i32
    %14 = vector.broadcast %c128_i32 : i32 to vector<8x128xi32>
    %15 = arith.select %13, %11, %14 : vector<8x128xi1>, vector<8x128xi32>
    %cst_8 = arith.constant dense<2147483647> : vector<8xi32>
    %16 = vector.multi_reduction <minsi>, %15, %cst_8 [1] : vector<8x128xi32> to vector<8xi32>
    %17 = vector.shape_cast %16 : vector<8xi32> to vector<8x1xi32>
    %18 = vector.broadcast %17 : vector<8x1xi32> to vector<8x128xi32>
    %19 = arith.cmpi eq, %11, %18 : vector<8x128xi32>
    %20 = arith.extui %19 : vector<8x128xi1> to vector<8x128xi32>
    %21 = arith.sitofp %20 : vector<8x128xi32> to vector<8x128xf32>
    %cst_9 = arith.constant dense<0.000000e+00> : vector<8x128xf32>
    %22 = tpu.matmul %21, %1, %cst_9 {dimension_numbers = #tpu.dot_dimension_numbers<[1], [0], [0], [1], [0, 0, 1, 1], [], []>} : vector<8x128xf32>, vector<128x128xf32>, vector<8x128xf32> -> vector<8x128xf32>
    %23 = arith.addf %0, %22 : vector<8x128xf32>
    %c0_10 = arith.constant 0 : index
    %c0_11 = arith.constant 0 : index
    %24 = vector.load %arg5[%c0_10, %c0_11] : memref<8x128xf32, #tpu.memory_space<vmem>>, vector<8x128xf32>
    tpu.vector_store %arg5[%c0_10, %c0_11], %23 {strides = array<i32>} : memref<8x128xf32, #tpu.memory_space<vmem>>, vector<8x128xf32>,
    return
  }
  func.func @transform_0(%arg0: i32) -> (i32, i32) {
    %c0_i32 = arith.constant 0 : i32
    %c0_i32_0 = arith.constant 0 : i32
    return %arg0, %c0_i32 : i32, i32
  }
  func.func @transform_1(%arg0: i32) -> (i32, i32) {
    %c0_i32 = arith.constant 0 : i32
    %c0_i32_0 = arith.constant 0 : i32
    %c0_i32_1 = arith.constant 0 : i32
    return %c0_i32, %c0_i32_0 : i32, i32
  }
  func.func @transform_2(%arg0: i32) -> (i32, i32) {
    %c0_i32 = arith.constant 0 : i32
    %c0_i32_0 = arith.constant 0 : i32
    %c0_i32_1 = arith.constant 0 : i32
    return %c0_i32, %c0_i32_0 : i32, i32
  }
  func.func @transform_3(%arg0: i32) -> (i32, i32) {
    %c0_i32 = arith.constant 0 : i32
    %c0_i32_0 = arith.constant 0 : i32
    %c0_i32_1 = arith.constant 0 : i32
    return %c0_i32, %c0_i32_0 : i32, i32
  }
  func.func @transform_4(%arg0: i32) -> (i32, i32) {
    %c0_i32 = arith.constant 0 : i32
    %c0_i32_0 = arith.constant 0 : i32
    return %arg0, %c0_i32 : i32, i32
  }
}

</mosaic_0001>

<llo_original>
// kernel: memory_module_forward.1
$region0: #{memory_module_forward.1}
  #allocation0 [shape = 'u32[]', space=smem, size = 0x4, offset = 0x4, fixed_abs, tag = 'smem constant byte address 0x4 - core index']
  #allocation1 [shape = 'u32[144,128]{1,0:T(1,128)}', space=vmem, size = 0x12000, scoped, tag = 'internal scratch']
  %s0 = inlined_call_operand.hbm [shape: f32[8,128], index: 0, kind: input, shape index: {}]
  %s1 = inlined_call_operand.hbm [shape: f32[128,128], index: 1, kind: input, shape index: {}]
  %s2 = inlined_call_operand.hbm [shape: f32[1,128], index: 2, kind: input, shape index: {}]
  %s3 = inlined_call_operand.hbm [shape: f32[1,128], index: 3, kind: input, shape index: {}]
  %s4 = inlined_call_operand.hbm [shape: f32[8,128], index: 4, kind: output, shape index: {}]
  %s5 = sld [smem:[#allocation0]]
  $region42: #{memory_module_forward.1} parent=0
    _
  %s7 = ssub.s32 1, %s5
  %s8 = scalar_select 0, %s7, %s5
  $region1: #{memory_module_forward.1} parent=0
    #allocation2 [shape = 'u8[4096]{0}', space=vmem, size = 0x1000, scoped, tag = 'input window, operand 0, single buffered']
    #allocation3 [shape = 's32[1]{0}', space=sflag, size = 0x4, scoped, tag = 'scoped memory for memory_module_forward.1']
    #allocation4 [shape = 's32[1]{0}', space=sflag, size = 0x4, scoped, tag = 'scoped memory for memory_module_forward.1']
    #allocation5 [shape = 'u8[65536]{0}', space=vmem, size = 0x10000, scoped, tag = 'input window, operand 1, single buffered']
    #allocation6 [shape = 's32[1]{0}', space=sflag, size = 0x4, scoped, tag = 'scoped memory for memory_module_forward.1']
    #allocation7 [shape = 'u8[512]{0}', space=vmem, size = 0x400, scoped, tag = 'input window, operand 2, single buffered']
    #allocation8 [shape = 'u8[512]{0}', space=vmem, size = 0x400, scoped, tag = 'input window, operand 3, single buffered']
    #allocation9 [shape = 's32[1]{0}', space=sflag, size = 0x4, scoped, tag = 'scoped memory for memory_module_forward.1']
    #allocation10 [shape = 'u8[4096]{0}', space=vmem, size = 0x1000, scoped, tag = 'output window, operand 0, single buffered']
    %9 = vsyncpa [#allocation3], 0
    %10 = vsyncpa [#allocation6], 0
    %11 = vsyncpa [#allocation9], 0
    %12 = vsyncpa [#allocation4], 0
    // Predicated region
    $region2: #{memory_module_forward.1} parent=1 // pred_check
      _
    $region3: #{memory_module_forward.1} parent=1 // pred_check_branch
      %14 = sbr.rel (0) target = $region5
    $region4: #{memory_module_forward.1} parent=1 // pred_region
      %s16 = ssub.s32 128, 128
      %17 = vsyncadd [#allocation3], %s16
      %s19 = sshll.u32 [#allocation2], 4
      %s20 = int_to_ptr.vmem [resolvable:$true] %s19
      %22 = dma.hbm_to_vmem [thread:$0]  %s0, 128, %s20, [#allocation3]
    $region5: #{memory_module_forward.1} parent=1 // pred_fallthru
      _
    // Predicated region
    $region6: #{memory_module_forward.1} parent=1 // pred_check
      _
    $region7: #{memory_module_forward.1} parent=1 // pred_check_branch
      %24 = sbr.rel (0) target = $region9
    $region8: #{memory_module_forward.1} parent=1 // pred_region
      %s26 = ssub.s32 2048, 2048
      %27 = vsyncadd [#allocation6], %s26
      %s28 = sshll.u32 [#allocation5], 4
      %s29 = int_to_ptr.vmem [resolvable:$true] %s28
      %34 = dma.hbm_to_vmem [thread:$0]  %s1, 2048, %s29, [#allocation6], 128, 128, 8
    $region9: #{memory_module_forward.1} parent=1 // pred_fallthru
      _
    // Predicated region
    $region10: #{memory_module_forward.1} parent=1 // pred_check
      _
    $region11: #{memory_module_forward.1} parent=1 // pred_check_branch
      %36 = sbr.rel (0) target = $region13
    $region12: #{memory_module_forward.1} parent=1 // pred_region
      %s38 = ssub.s32 16, 16
      %39 = vsyncadd [#allocation6], %s38
      %s41 = sshll.u32 [#allocation7], 4
      %s42 = int_to_ptr.vmem [resolvable:$true] %s41
      %44 = dma.hbm_to_vmem [thread:$0]  %s2, 16, %s42, [#allocation6]
    $region13: #{memory_module_forward.1} parent=1 // pred_fallthru
      _
    // Predicated region
    $region14: #{memory_module_forward.1} parent=1 // pred_check
      _
    $region15: #{memory_module_forward.1} parent=1 // pred_check_branch
      %46 = sbr.rel (0) target = $region17
    $region16: #{memory_module_forward.1} parent=1 // pred_region
      %s48 = ssub.s32 16, 16
      %49 = vsyncadd [#allocation9], %s48
      %s51 = sshll.u32 [#allocation8], 4
      %s52 = int_to_ptr.vmem [resolvable:$true] %s51
      %54 = dma.hbm_to_vmem [thread:$0]  %s3, 16, %s52, [#allocation9]
    $region17: #{memory_module_forward.1} parent=1 // pred_fallthru
      _
    // Predicated region
    $region18: #{memory_module_forward.1} parent=1 // pred_check
      _
    $region19: #{memory_module_forward.1} parent=1 // pred_check_branch
      %56 = sbr.rel (0) target = $region21
    $region20: #{memory_module_forward.1} parent=1 // pred_region
      %57 = dma.done [#allocation3], 128
    $region21: #{memory_module_forward.1} parent=1 // pred_fallthru
      _
    // Predicated region
    $region22: #{memory_module_forward.1} parent=1 // pred_check
      _
    $region23: #{memory_module_forward.1} parent=1 // pred_check_branch
      %59 = sbr.rel (0) target = $region25
    $region24: #{memory_module_forward.1} parent=1 // pred_region
      %60 = dma.done [#allocation6], 2048
    $region25: #{memory_module_forward.1} parent=1 // pred_fallthru
      _
    // Predicated region
    $region26: #{memory_module_forward.1} parent=1 // pred_check
      _
    $region27: #{memory_module_forward.1} parent=1 // pred_check_branch
      %62 = sbr.rel (0) target = $region29
    $region28: #{memory_module_forward.1} parent=1 // pred_region
      %63 = dma.done [#allocation6], 16
    $region29: #{memory_module_forward.1} parent=1 // pred_fallthru
      _
    // Predicated region
    $region30: #{memory_module_forward.1} parent=1 // pred_check
      _
    $region31: #{memory_module_forward.1} parent=1 // pred_check_branch
      %65 = sbr.rel (0) target = $region33
    $region32: #{memory_module_forward.1} parent=1 // pred_region
      %66 = dma.done [#allocation9], 16
    $region33: #{memory_module_forward.1} parent=1 // pred_fallthru
      _
    %v67 = vld [vmem:[#allocation2] sm:$0xff]
    %v68 = vld [vmem:[#allocation5] sm:$0xff]
    %v69 = vld [vmem:[#allocation5 + $0x8] sm:$0xff]
    %v70 = vld [vmem:[#allocation5 + $0x10] sm:$0xff]
    %v71 = vld [vmem:[#allocation5 + $0x18] sm:$0xff]
    %v72 = vld [vmem:[#allocation5 + $0x20] sm:$0xff]
    %v73 = vld [vmem:[#allocation5 + $0x28] sm:$0xff]
    %v74 = vld [vmem:[#allocation5 + $0x30] sm:$0xff]
    %v75 = vld [vmem:[#allocation5 + $0x38] sm:$0xff]
    %v76 = vld [vmem:[#allocation5 + $0x40] sm:$0xff]
    %v77 = vld [vmem:[#allocation5 + $0x48] sm:$0xff]
    %v78 = vld [vmem:[#allocation5 + $0x50] sm:$0xff]
    %v79 = vld [vmem:[#allocation5 + $0x58] sm:$0xff]
    %v80 = vld [vmem:[#allocation5 + $0x60] sm:$0xff]
    %v81 = vld [vmem:[#allocation5 + $0x68] sm:$0xff]
    %v82 = vld [vmem:[#allocation5 + $0x70] sm:$0xff]
    %v83 = vld [vmem:[#allocation5 + $0x78] sm:$0xff]
    %v84 = vld [vmem:[#allocation7] sm:$0x1]
    %v85 = vld [vmem:[#allocation8] sm:$0x1]
    %86 = vmatprep.subr.mxu0 0.0
    %87 = vmatpush1.xpose.msra.mxu0 %v68
    %88 = vmatprep.subr.mxu0 0.0
    %89 = vmatpush1.xpose.msra.mxu0 %v69
    %90 = vmatprep.subr.mxu0 0.0
    %91 = vmatpush1.xpose.msra.mxu0 %v70
    %92 = vmatprep.subr.mxu0 0.0
    %93 = vmatpush1.xpose.msra.mxu0 %v71
    %94 = vmatprep.subr.mxu0 0.0
    %95 = vmatpush1.xpose.msra.mxu0 %v72
    %96 = vmatprep.subr.mxu0 0.0
    %97 = vmatpush1.xpose.msra.mxu0 %v73
    %98 = vmatprep.subr.mxu0 0.0
    %99 = vmatpush1.xpose.msra.mxu0 %v74
    %100 = vmatprep.subr.mxu0 0.0
    %101 = vmatpush1.xpose.msra.mxu0 %v75
    %102 = vmatprep.subr.mxu0 0.0
    %103 = vmatpush1.xpose.msra.mxu0 %v76
    %104 = vmatprep.subr.mxu0 0.0
    %105 = vmatpush1.xpose.msra.mxu0 %v77
    %106 = vmatprep.subr.mxu0 0.0
    %107 = vmatpush1.xpose.msra.mxu0 %v78
    %108 = vmatprep.subr.mxu0 0.0
    %109 = vmatpush1.xpose.msra.mxu0 %v79
    %110 = vmatprep.subr.mxu0 0.0
    %111 = vmatpush1.xpose.msra.mxu0 %v80
    %112 = vmatprep.subr.mxu0 0.0
    %113 = vmatpush1.xpose.msra.mxu0 %v81
    %114 = vmatprep.subr.mxu0 0.0
    %115 = vmatpush1.xpose.msra.mxu0 %v82
    %116 = vmatprep.subr.mxu0 0.0
    %117 = vmatpush1.xpose.msra.mxu0 %v83
    %118 = vmatprep.subr.mxu0 0.0
    %119 = vmatpush1.xpose.msra.mxu0 0.0
    %120 = vmatprep.subr.mxu0 0.0
    %121 = vmatpush1.xpose.msra.mxu0 0.0
    %122 = vmatprep.subr.mxu0 0.0
    %123 = vmatpush1.xpose.msra.mxu0 0.0
    %124 = vmatprep.subr.mxu0 0.0
    %125 = vmatpush1.xpose.msra.mxu0 0.0
    %126 = vmatprep.subr.mxu0 0.0
    %127 = vmatpush1.xpose.msra.mxu0 0.0
    %128 = vmatprep.subr.mxu0 0.0
    %129 = vmatpush1.xpose.msra.mxu0 0.0
    %130 = vmatprep.subr.mxu0 0.0
    %131 = vmatpush1.xpose.msra.mxu0 0.0
    %132 = vmatprep.subr.mxu0 0.0
    %133 = vmatpush1.xpose.msra.mxu0 0.0
    %134 = vmatprep.subr.mxu0 0.0
    %135 = vmatpush1.xpose.msra.mxu0 0.0
    %136 = vmatprep.subr.mxu0 0.0
    %137 = vmatpush1.xpose.msra.mxu0 0.0
    %138 = vmatprep.subr.mxu0 0.0
    %139 = vmatpush1.xpose.msra.mxu0 0.0
    %140 = vmatprep.subr.mxu0 0.0
    %141 = vmatpush1.xpose.msra.mxu0 0.0
    %142 = vmatprep.subr.mxu0 0.0
    %143 = vmatpush1.xpose.msra.mxu0 0.0
    %144 = vmatprep.subr.mxu0 0.0
    %145 = vmatpush1.xpose.msra.mxu0 0.0
    %146 = vmatprep.subr.mxu0 0.0
    %147 = vmatpush1.xpose.msra.mxu0 0.0
    %148 = vmatprep.subr.mxu0 0.0
    %149 = vmatpush1.xpose.msra.mxu0 0.0
    %150 = vmatprep.mubr.f32.mxu0 0.0
    %151 = vmatmul.mubr.f32.gmra.mrb[0].mxu0 %v67
    %v152 = vpop.f32.mrb[0].mxu0
    %v153 = vadd.f32 0.0, %v152
    %v154 = vpop.f32.mrb[0].mxu0
    %155 = vdwg.mxu0
    %v157 = vlaneseq
    %v158 = vshrl.u32 %v157, 7
    %v159 = vsub.s32 0, %v158
    %v160 = vrot.slane %v84, %v159
    %v162 = vmul.f32 %v153, %v160
    %v164 = vlaneseq
    %v165 = vshrl.u32 %v164, 7
    %v166 = vsub.s32 0, %v165
    %v167 = vrot.slane %v85, %v166
    %v169 = vadd.f32 %v162, %v167
    %170 = vmax.xlane.f32.xlu0 %v169
    %v171 = vpop.xlane.xlu0 %170
    %v172 = vlaneseq
    %v173 = vand.u32 %v172, 127
    %vm174 = vcmp.ge.f32.partialorder %v169, %v171
    %v175 = vsel %vm174, %v173, 128
    %v176 = vand.u32 %v175, 65535
    %v177 = vshra.s32 %v175, 16
    %v178 = vcvt.s32.f32 %v176
    %v179 = vcvt.s32.f32 %v177
    %180 = vmin.xlane.f32.xlu0 %v179
    %v181 = vpop.xlane.xlu0 %180
    %vm182 = vcmp.eq.f32.partialorder %v179, %v181
    %v183 = vsel %vm182, %v178, inf
    %184 = vmin.xlane.f32.xlu0 %v183
    %v185 = vpop.xlane.xlu0 %184
    %v186 = vcvt.f32.s32 %v185
    %v187 = vcvt.f32.s32 %v181
    %v188 = vshll.u32 %v187, 16
    %v189 = vadd.s32 %v188, %v186
    %vm190 = vcmp.eq.s32.totalorder %v173, %v189
    %v191 = vsel %vm190, 1, 0
    %v192 = vcvt.s32.f32 %v191
    %193 = vmatprep.subr.mxu0 0.0
    %194 = vmatpush1.msra.mxu0 %v68
    %195 = vmatprep.subr.mxu0 0.0
    %196 = vmatpush1.msra.mxu0 %v69
    %197 = vmatprep.subr.mxu0 0.0
    %198 = vmatpush1.msra.mxu0 %v70
    %199 = vmatprep.subr.mxu0 0.0
    %200 = vmatpush1.msra.mxu0 %v71
    %201 = vmatprep.subr.mxu0 0.0
    %202 = vmatpush1.msra.mxu0 %v72
    %203 = vmatprep.subr.mxu0 0.0
    %204 = vmatpush1.msra.mxu0 %v73
    %205 = vmatprep.subr.mxu0 0.0
    %206 = vmatpush1.msra.mxu0 %v74
    %207 = vmatprep.subr.mxu0 0.0
    %208 = vmatpush1.msra.mxu0 %v75
    %209 = vmatprep.subr.mxu0 0.0
    %210 = vmatpush1.msra.mxu0 %v76
    %211 = vmatprep.subr.mxu0 0.0
    %212 = vmatpush1.msra.mxu0 %v77
    %213 = vmatprep.subr.mxu0 0.0
    %214 = vmatpush1.msra.mxu0 %v78
    %215 = vmatprep.subr.mxu0 0.0
    %216 = vmatpush1.msra.mxu0 %v79
    %217 = vmatprep.subr.mxu0 0.0
    %218 = vmatpush1.msra.mxu0 %v80
    %219 = vmatprep.subr.mxu0 0.0
    %220 = vmatpush1.msra.mxu0 %v81
    %221 = vmatprep.subr.mxu0 0.0
    %222 = vmatpush1.msra.mxu0 %v82
    %223 = vmatprep.subr.mxu0 0.0
    %224 = vmatpush1.msra.mxu0 %v83
    %225 = vmatprep.subr.mxu0 0.0
    %226 = vmatpush1.msra.mxu0 0.0
    %227 = vmatprep.subr.mxu0 0.0
    %228 = vmatpush1.msra.mxu0 0.0
    %229 = vmatprep.subr.mxu0 0.0
    %230 = vmatpush1.msra.mxu0 0.0
    %231 = vmatprep.subr.mxu0 0.0
    %232 = vmatpush1.msra.mxu0 0.0
    %233 = vmatprep.subr.mxu0 0.0
    %234 = vmatpush1.msra.mxu0 0.0
    %235 = vmatprep.subr.mxu0 0.0
    %236 = vmatpush1.msra.mxu0 0.0
    %237 = vmatprep.subr.mxu0 0.0
    %238 = vmatpush1.msra.mxu0 0.0
    %239 = vmatprep.subr.mxu0 0.0
    %240 = vmatpush1.msra.mxu0 0.0
    %241 = vmatprep.subr.mxu0 0.0
    %242 = vmatpush1.msra.mxu0 0.0
    %243 = vmatprep.subr.mxu0 0.0
    %244 = vmatpush1.msra.mxu0 0.0
    %245 = vmatprep.subr.mxu0 0.0
    %246 = vmatpush1.msra.mxu0 0.0
    %247 = vmatprep.subr.mxu0 0.0
    %248 = vmatpush1.msra.mxu0 0.0
    %249 = vmatprep.subr.mxu0 0.0
    %250 = vmatpush1.msra.mxu0 0.0
    %251 = vmatprep.subr.mxu0 0.0
    %252 = vmatpush1.msra.mxu0 0.0
    %253 = vmatprep.subr.mxu0 0.0
    %254 = vmatpush1.msra.mxu0 0.0
    %255 = vmatprep.subr.mxu0 0.0
    %256 = vmatpush1.msra.mxu0 0.0
    %257 = vmatprep.mubr.f32.mxu0 0.0
    %258 = vmatmul.mubr.f32.gmra.mrb[0].mxu0 %v192
    %v259 = vpop.f32.mrb[0].mxu0
    %v260 = vadd.f32 0.0, %v259
    %v261 = vpop.f32.mrb[0].mxu0
    %262 = vdwg.mxu0
    %v263 = vadd.f32 %v67, %v260
    %264 = vst [vmem:[#allocation10] sm:$0xff] %v263
    // Predicated region
    $region34: #{memory_module_forward.1} parent=1 // pred_check
      _
    $region35: #{memory_module_forward.1} parent=1 // pred_check_branch
      %266 = sbr.rel (0) target = $region37
    $region36: #{memory_module_forward.1} parent=1 // pred_region
      %s268 = ssub.s32 128, 128
      %269 = vsyncadd [#allocation4], %s268
      %s271 = sshll.u32 [#allocation10], 4
      %s272 = int_to_ptr.vmem [resolvable:$true] %s271
      %274 = dma.vmem_to_hbm [thread:$0]  %s272, 128, %s4, [#allocation4]
    $region37: #{memory_module_forward.1} parent=1 // pred_fallthru
      _
    // Predicated region
    $region38: #{memory_module_forward.1} parent=1 // pred_check
      _
    $region39: #{memory_module_forward.1} parent=1 // pred_check_branch
      %276 = sbr.rel (0) target = $region41
    $region40: #{memory_module_forward.1} parent=1 // pred_region
      %277 = dma.done [#allocation4], 128
    $region41: #{memory_module_forward.1} parent=1 // pred_fallthru
      _
    %278 = vsyncpa [#allocation3], 1
    %279 = vsyncpa [#allocation6], 1
    %280 = vsyncpa [#allocation9], 1
    %281 = vsyncpa [#allocation4], 1

</llo_original>
